<compile_context>
chip_gen: v5e
topology: v5e:2x2
jax: 0.10.0
libtpu: 0.0.40
codegen_flags: <defaults>
</compile_context>

<pallas_src>
import functools

import jax
import jax.numpy as jnp
from jax.experimental import pallas as pl
from jax.experimental.pallas import tpu as pltpu

LV = 36.0        # len(var) from preprocess/data/var.pkl; synthetic constant (file not read)
LPAD = 128       # one full lane tile: fused-GEMM K and the w2 output width
HIDDEN = 128     # surrogate hidden width (128-multiple; 256 also matches v6e/v7x MXU tiles)
TB = 128         # default batch tile (rows / MXU M); adaptively reduced for small B


def _tdstf_loss_kernel(ypack_ref, xstat_ref, w1_ref, w2_ref, loss_ref, feat_ref, *, ly):
    """One batch tile: y-channel rewrites + q-sample + surrogate MLP + partial loss sum.

    ypack (f32, TB x 128) lanes: [ fy | ty | vy | my | noise | asq | omasq | 0... ]
    xstat (bf16, TB x 128) lanes: [ 0(4*ly) | x0 | x1 | x2 | mx | temb(4) | 1.0 | 0... ]
    """
    fy = ypack_ref[:, 0 * ly:1 * ly]
    ty = ypack_ref[:, 1 * ly:2 * ly]
    vy = ypack_ref[:, 2 * ly:3 * ly]
    my = ypack_ref[:, 3 * ly:4 * ly]
    noise = ypack_ref[:, 4 * ly:5 * ly]
    asq = ypack_ref[:, 5 * ly:5 * ly + 1]        # sqrt(alpha_t)        (TB, 1)
    omasq = ypack_ref[:, 5 * ly + 1:5 * ly + 2]  # sqrt(1 - alpha_t)    (TB, 1)

    # mask-conditioned rewrites (torch.where(mask == 1, val, lv / -1))
    y0 = jnp.where(my == 1.0, fy, jnp.float32(LV))
    y1 = jnp.where(my == 1.0, ty, jnp.float32(-1.0))
    # q-sample on channel 2 (aliased into samples_y0/samples_yt in the reference code)
    yt2 = (asq * vy + omasq * noise) * my

    # Build the (TB, 128) bf16 feature tile: copy the pre-packed static part, then
    # overwrite the dynamic y lanes with cheap masked narrow stores.
    feat_ref[...] = xstat_ref[...]
    feat_ref[:, 0 * ly:1 * ly] = y0.astype(jnp.bfloat16)
    feat_ref[:, 1 * ly:2 * ly] = y1.astype(jnp.bfloat16)
    feat_ref[:, 2 * ly:3 * ly] = yt2.astype(jnp.bfloat16)
    feat_ref[:, 3 * ly:4 * ly] = my.astype(jnp.bfloat16)

    # TODO(synk): res_model (ResNet denoiser) unavailable; fused single-GEMM MLP surrogate.
    # Biases are folded into w1/w2 (constant-1 feature lane + constant-1 hidden unit).
    h = jnp.tanh(jnp.dot(feat_ref[...], w1_ref[...],
                         preferred_element_type=jnp.float32))          # (TB, H) f32
    pred = jnp.dot(h.astype(jnp.bfloat16), w2_ref[...],
                   preferred_element_type=jnp.float32)                 # (TB, 128) f32

    residual = jnp.where(my == 1.0, yt2 - pred[:, 0:ly], jnp.float32(0.0))
    loss_ref[0, 0] = jnp.sum(residual * residual)   # per-tile partial sum -> SMEM


def _round_up(x, m):
    return (x + m - 1) // m * m


def tdstf_forward_loss(samples_x, samples_y, info, t, noise, alpha, params, *, tb=TB):
    """Wrapper: tight lane packing (x-static / y-dynamic slabs), alpha_t gather, kernel call."""
    B, _, lx = samples_x.shape
    ly = samples_y.shape[2]
    assert 5 * ly + 2 <= LPAD, "y channels + noise + diffusion scalars must fit in 128 lanes"
    assert 4 * ly + 4 * lx + 5 <= LPAD, "tight feature packing must fit in 128 lanes"

    # batch tile: as large as possible up to `tb`, but keep >=2 grid steps when B allows it
    # so the 'parallel' batch axis uses both TensorCores on v7x.
    tb = max(8, _round_up(min(tb, _round_up(B, 8)), 8))
    bp = _round_up(B, tb)
    if bp // tb < 2 and tb > 8:
        tb = max(8, _round_up(tb // 2, 8))
        bp = _round_up(B, tb)

    f32 = jnp.float32
    sx = samples_x.astype(f32)
    sy = samples_y.astype(f32)

    # per-row diffusion params + step embedding
    current_alpha = alpha[t].astype(f32)[:, None]                         # (B, 1)
    asq = jnp.sqrt(current_alpha)
    omasq = jnp.sqrt(1.0 - current_alpha)
    tf_ = t.astype(f32)[:, None]
    temb = jnp.concatenate([jnp.sin(tf_ * 0.1), jnp.cos(tf_ * 0.1),
                            jnp.sin(tf_ * 0.01), jnp.cos(tf_ * 0.01)], axis=-1)  # (B, 4)

    # x-static features (pure where()/layout -> packed in the wrapper, shipped once, bf16)
    mx = sx[:, 3]
    x0 = jnp.where(mx == 1.0, sx[:, 0], f32(LV))
    x1 = jnp.where(mx == 1.0, sx[:, 1], f32(-1.0))
    ones = jnp.ones((B, 1), f32)                                          # bias lane for b1
    xstat = jnp.concatenate(
        [jnp.zeros((B, 4 * ly), f32), x0, x1, sx[:, 2], mx, temb, ones], axis=-1)
    xstat = jnp.pad(xstat, ((0, bp - B), (0, LPAD - xstat.shape[1]))).astype(jnp.bfloat16)

    # y-dynamic slab (kernel computes rewrites / q-sample / residual in f32)
    ypack = jnp.concatenate(
        [sy[:, 0], sy[:, 1], sy[:, 2], sy[:, 3], noise.astype(f32), asq, omasq], axis=-1)
    ypack = jnp.pad(ypack, ((0, bp - B), (0, LPAD - ypack.shape[1])))

    grid = (bp // tb,)
    H = params["w1"].shape[1]

    partial = pl.pallas_call(
        functools.partial(_tdstf_loss_kernel, ly=ly),
        out_shape=jax.ShapeDtypeStruct((grid[0], 1), jnp.float32),
        grid_spec=pltpu.PrefetchScalarGridSpec(
            num_scalar_prefetch=0,
            grid=grid,
            in_specs=[
                pl.BlockSpec((tb, LPAD), lambda i: (i, 0)),   # ypack (f32)
                pl.BlockSpec((tb, LPAD), lambda i: (i, 0)),   # xstat (bf16)
                pl.BlockSpec((LPAD, H), lambda i: (0, 0)),    # w1 (resident)
                pl.BlockSpec((H, LPAD), lambda i: (0, 0)),    # w2 (resident)
            ],
            out_specs=pl.BlockSpec((1, 1), lambda i: (i, 0),
                                   memory_space=pltpu.MemorySpace.SMEM),
            scratch_shapes=[pltpu.VMEM((tb, LPAD), jnp.bfloat16)],
        ),
        compiler_params=pltpu.CompilerParams(
            dimension_semantics=("parallel",),
        ),
    )(ypack, xstat, params["w1"], params["w2"])

    denom = jnp.sum(info[:, 2].astype(jnp.float32))
    return jnp.sum(partial) / denom


def make_surrogate_params(key, lx, ly, *, lpad=LPAD, hidden=HIDDEN):
    """Deterministic surrogate weights, packed to the tight 128-lane feature layout.

    w1 rows follow the feature lanes: [y0|y1|yt2|my | x0|x1|x2|mx | temb(4) | bias-1 | 0...].
    b1 is folded via the constant-1.0 feature lane; b2 via a constant-1.0 hidden unit
    (column hidden-1 only fed by the bias lane with weight 30 -> tanh(30) == 1.0 in f32).
    """
    nfeat = 4 * ly + 4 * lx + 4
    assert nfeat + 1 <= lpad
    ks = jax.random.split(key, 4)
    s = 0.1
    w1 = s * jax.random.normal(ks[0], (nfeat, hidden), jnp.float32)
    b1 = s * jax.random.normal(ks[1], (hidden,), jnp.float32)
    w2 = s * jax.random.normal(ks[2], (hidden, ly), jnp.float32)
    b2 = s * jax.random.normal(ks[3], (ly,), jnp.float32)

    bias_row = nfeat
    w1_full = jnp.zeros((lpad, hidden), jnp.float32)
    w1_full = w1_full.at[:nfeat, :].set(w1)
    w1_full = w1_full.at[bias_row, :].set(b1)
    w1_full = w1_full.at[:, hidden - 1].set(0.0)        # constant-1 hidden unit ...
    w1_full = w1_full.at[bias_row, hidden - 1].set(30.0)  # ... tanh(30) == 1.0 (f32)

    w2_full = jnp.zeros((hidden, lpad), jnp.float32)
    w2_full = w2_full.at[:, :ly].set(w2)
    w2_full = w2_full.at[hidden - 1, :ly].set(b2)        # folded b2

    return {
        "w1": w1_full.astype(jnp.bfloat16),   # bf16 MXU operands, f32 accumulation
        "w2": w2_full.astype(jnp.bfloat16),
    }


if __name__ == "__main__":
    B, LX, LY = 2, 16, 8
    NUM_STEPS, BETA_START, BETA_END = 50, 1e-4, 0.5

    key = jax.random.PRNGKey(0)
    keys = jax.random.split(key, 12)

    # diffusion schedule (matches __init__)
    beta = jnp.linspace(BETA_START ** 0.5, BETA_END ** 0.5, NUM_STEPS) ** 2
    alpha_hat = 1.0 - beta
    alpha = jnp.cumprod(alpha_hat)

    # samples_x: (B, 4, Lx)  [feature-id, time, value, mask]
    fx = jax.random.randint(keys[0], (B, LX), 0, int(LV)).astype(jnp.float32)
    tx = jax.random.uniform(keys[1], (B, LX), jnp.float32)
    vx = jax.random.normal(keys[2], (B, LX), jnp.float32)
    mx = jax.random.bernoulli(keys[3], 0.7, (B, LX)).astype(jnp.float32)
    samples_x = jnp.stack([fx, tx, vx, mx], axis=1)

    # samples_y: (B, 4, Ly)
    fy = jax.random.randint(keys[4], (B, LY), 0, int(LV)).astype(jnp.float32)
    ty = jax.random.uniform(keys[5], (B, LY), jnp.float32)
    vy = jax.random.normal(keys[6], (B, LY), jnp.float32)
    my = jax.random.bernoulli(keys[7], 0.7, (B, LY)).astype(jnp.float32)
    my = my.at[:, 0].set(1.0)  # ensure at least one observed target per batch
    samples_y = jnp.stack([fy, ty, vy, my], axis=1)

    # info: (B, 3) int32, info[:, 2] = #observed target points
    n_obs = jnp.sum(my, axis=-1).astype(jnp.int32)
    info = jnp.stack([jnp.zeros((B,), jnp.int32),
                      jnp.full((B,), LY, jnp.int32),
                      n_obs], axis=-1)

    t = jax.random.randint(keys[8], (B,), 0, NUM_STEPS)
    noise = jax.random.normal(keys[9], (B, LY), jnp.float32)
    params = make_surrogate_params(keys[10], LX, LY)

    loss = tdstf_forward_loss(samples_x, samples_y, info, t, noise, alpha, params)
    jax.block_until_ready(loss)
    assert jnp.isfinite(loss)
    print("KERNEL_OK")
</pallas_src>

<mosaic_0001>
module attributes {stable_mosaic.version = 11 : i64} {
  func.func @_tdstf_loss_kernel(%arg0: i32, %arg1: memref<8x128xf32, #tpu.memory_space<vmem>>, %arg2: memref<8x128xbf16, #tpu.memory_space<vmem>>, %arg3: memref<128x128xbf16, #tpu.memory_space<vmem>>, %arg4: memref<128x128xbf16, #tpu.memory_space<vmem>>, %arg5: memref<1x1xf32, #tpu.memory_space<smem>>, %arg6: memref<8x128xbf16, #tpu.memory_space<vmem>>) attributes {dimension_semantics = [#tpu.dimension_semantics<parallel>], iteration_bounds = array<i64: 1>, scalar_prefetch = 0 : i64, scratch_operands = 1 : i64, tpu.core_type = #tpu.core_type<tc>, window_params = [{transform_indices = @transform_0, window_bounds = array<i64: 8, 128>}, {transform_indices = @transform_1, window_bounds = array<i64: 8, 128>}, {pipeline_mode = #tpu.pipeline_mode<synchronous>, transform_indices = @transform_2, window_bounds = array<i64: 128, 128>}, {pipeline_mode = #tpu.pipeline_mode<synchronous>, transform_indices = @transform_3, window_bounds = array<i64: 128, 128>}, {transform_indices = @transform_4, window_bounds = array<i64: 1, 1>}]} {
    %c0 = arith.constant 0 : index
    %c0_0 = arith.constant 0 : index
    %0 = vector.load %arg1[%c0, %c0_0] : memref<8x128xf32, #tpu.memory_space<vmem>>, vector<8x8xf32>
    %c0_1 = arith.constant 0 : index
    %c8 = arith.constant 8 : index
    %1 = vector.load %arg1[%c0_1, %c8] : memref<8x128xf32, #tpu.memory_space<vmem>>, vector<8x8xf32>
    %c0_2 = arith.constant 0 : index
    %c16 = arith.constant 16 : index
    %2 = vector.load %arg1[%c0_2, %c16] : memref<8x128xf32, #tpu.memory_space<vmem>>, vector<8x8xf32>
    %c0_3 = arith.constant 0 : index
    %c24 = arith.constant 24 : index
    %3 = vector.load %arg1[%c0_3, %c24] : memref<8x128xf32, #tpu.memory_space<vmem>>, vector<8x8xf32>
    %c0_4 = arith.constant 0 : index
    %c32 = arith.constant 32 : index
    %4 = vector.load %arg1[%c0_4, %c32] : memref<8x128xf32, #tpu.memory_space<vmem>>, vector<8x8xf32>
    %c0_5 = arith.constant 0 : index
    %c40 = arith.constant 40 : index
    %5 = vector.load %arg1[%c0_5, %c40] : memref<8x128xf32, #tpu.memory_space<vmem>>, vector<8x1xf32>
    %c0_6 = arith.constant 0 : index
    %c41 = arith.constant 41 : index
    %6 = vector.load %arg1[%c0_6, %c41] : memref<8x128xf32, #tpu.memory_space<vmem>>, vector<8x1xf32>
    %cst = arith.constant 1.000000e+00 : f32
    %7 = vector.broadcast %cst : f32 to vector<8x8xf32>
    %8 = arith.cmpf oeq, %3, %7 : vector<8x8xf32>
    %cst_7 = arith.constant 3.600000e+01 : f32
    %9 = vector.broadcast %cst_7 : f32 to vector<8x8xf32>
    %10 = arith.select %8, %0, %9 : vector<8x8xi1>, vector<8x8xf32>
    %cst_8 = arith.constant 1.000000e+00 : f32
    %11 = vector.broadcast %cst_8 : f32 to vector<8x8xf32>
    %12 = arith.cmpf oeq, %3, %11 : vector<8x8xf32>
    %cst_9 = arith.constant -1.000000e+00 : f32
    %13 = vector.broadcast %cst_9 : f32 to vector<8x8xf32>
    %14 = arith.select %12, %1, %13 : vector<8x8xi1>, vector<8x8xf32>
    %15 = vector.broadcast %5 : vector<8x1xf32> to vector<8x8xf32>
    %16 = arith.mulf %15, %2 : vector<8x8xf32>
    %17 = vector.broadcast %6 : vector<8x1xf32> to vector<8x8xf32>
    %18 = arith.mulf %17, %4 : vector<8x8xf32>
    %19 = arith.addf %16, %18 : vector<8x8xf32>
    %20 = arith.mulf %19, %3 : vector<8x8xf32>
    %c0_10 = arith.constant 0 : index
    %c0_11 = arith.constant 0 : index
    %21 = vector.load %arg2[%c0_10, %c0_11] : memref<8x128xbf16, #tpu.memory_space<vmem>>, vector<8x128xbf16>
    %c0_12 = arith.constant 0 : index
    %c0_13 = arith.constant 0 : index
    %22 = vector.load %arg6[%c0_12, %c0_13] : memref<8x128xbf16, #tpu.memory_space<vmem>>, vector<8x128xbf16>
    tpu.vector_store %arg6[%c0_12, %c0_13], %21 {strides = array<i32>} : memref<8x128xbf16, #tpu.memory_space<vmem>>, vector<8x128xbf16>,
    %23 = arith.truncf %10 : vector<8x8xf32> to vector<8x8xbf16>
    %c0_14 = arith.constant 0 : index
    %c0_15 = arith.constant 0 : index
    %24 = vector.load %arg6[%c0_14, %c0_15] : memref<8x128xbf16, #tpu.memory_space<vmem>>, vector<8x8xbf16>
    tpu.vector_store %arg6[%c0_14, %c0_15], %23 {strides = array<i32>} : memref<8x128xbf16, #tpu.memory_space<vmem>>, vector<8x8xbf16>,
    %25 = arith.truncf %14 : vector<8x8xf32> to vector<8x8xbf16>
    %c0_16 = arith.constant 0 : index
    %c8_17 = arith.constant 8 : index
    %26 = vector.load %arg6[%c0_16, %c8_17] : memref<8x128xbf16, #tpu.memory_space<vmem>>, vector<8x8xbf16>
    tpu.vector_store %arg6[%c0_16, %c8_17], %25 {strides = array<i32>} : memref<8x128xbf16, #tpu.memory_space<vmem>>, vector<8x8xbf16>,
    %27 = arith.truncf %20 : vector<8x8xf32> to vector<8x8xbf16>
    %c0_18 = arith.constant 0 : index
    %c16_19 = arith.constant 16 : index
    %28 = vector.load %arg6[%c0_18, %c16_19] : memref<8x128xbf16, #tpu.memory_space<vmem>>, vector<8x8xbf16>
    tpu.vector_store %arg6[%c0_18, %c16_19], %27 {strides = array<i32>} : memref<8x128xbf16, #tpu.memory_space<vmem>>, vector<8x8xbf16>,
    %29 = arith.truncf %3 : vector<8x8xf32> to vector<8x8xbf16>
    %c0_20 = arith.constant 0 : index
    %c24_21 = arith.constant 24 : index
    %30 = vector.load %arg6[%c0_20, %c24_21] : memref<8x128xbf16, #tpu.memory_space<vmem>>, vector<8x8xbf16>
    tpu.vector_store %arg6[%c0_20, %c24_21], %29 {strides = array<i32>} : memref<8x128xbf16, #tpu.memory_space<vmem>>, vector<8x8xbf16>,
    %c0_22 = arith.constant 0 : index
    %c0_23 = arith.constant 0 : index
    %31 = vector.load %arg6[%c0_22, %c0_23] : memref<8x128xbf16, #tpu.memory_space<vmem>>, vector<8x128xbf16>
    %c0_24 = arith.constant 0 : index
    %c0_25 = arith.constant 0 : index
    %32 = vector.load %arg3[%c0_24, %c0_25] : memref<128x128xbf16, #tpu.memory_space<vmem>>, vector<128x128xbf16>
    %cst_26 = arith.constant dense<0.000000e+00> : vector<8x128xf32>
    %33 = tpu.matmul %31, %32, %cst_26 {dimension_numbers = #tpu.dot_dimension_numbers<[1], [0], [0], [1], [0, 0, 1, 1], [], []>} : vector<8x128xbf16>, vector<128x128xbf16>, vector<8x128xf32> -> vector<8x128xf32>
    %34 = math.tanh %33 : vector<8x128xf32>
    %35 = arith.truncf %34 : vector<8x128xf32> to vector<8x128xbf16>
    %c0_27 = arith.constant 0 : index
    %c0_28 = arith.constant 0 : index
    %36 = vector.load %arg4[%c0_27, %c0_28] : memref<128x128xbf16, #tpu.memory_space<vmem>>, vector<128x128xbf16>
    %cst_29 = arith.constant dense<0.000000e+00> : vector<8x128xf32>
    %37 = tpu.matmul %35, %36, %cst_29 {dimension_numbers = #tpu.dot_dimension_numbers<[1], [0], [0], [1], [0, 0, 1, 1], [], []>} : vector<8x128xbf16>, vector<128x128xbf16>, vector<8x128xf32> -> vector<8x128xf32>
    %cst_30 = arith.constant 1.000000e+00 : f32
    %38 = vector.broadcast %cst_30 : f32 to vector<8x8xf32>
    %39 = arith.cmpf oeq, %3, %38 : vector<8x8xf32>
    %40 = vector.extract_strided_slice %37 {offsets = [0, 0], sizes = [8, 8], strides = [1, 1]} : vector<8x128xf32> to vector<8x8xf32>
    %41 = arith.subf %20, %40 : vector<8x8xf32>
    %cst_31 = arith.constant 0.000000e+00 : f32
    %42 = vector.broadcast %cst_31 : f32 to vector<8x8xf32>
    %43 = arith.select %39, %41, %42 : vector<8x8xi1>, vector<8x8xf32>
    %44 = arith.mulf %43, %43 : vector<8x8xf32>
    %45 = vector.shape_cast %44 : vector<8x8xf32> to vector<1x8x8xf32>
    %cst_32 = arith.constant dense<0.000000e+00> : vector<1xf32>
    %46 = vector.multi_reduction <add>, %45, %cst_32 [1, 2] : vector<1x8x8xf32> to vector<1xf32>
    %47 = vector.shape_cast %46 : vector<1xf32> to vector<1x1x1xf32>
    %48 = vector.extract %47[0, 0, 0] : f32 from vector<1x1x1xf32>
    %c0_33 = arith.constant 0 : index
    %c0_34 = arith.constant 0 : index
    %49 = memref.load %arg5[%c0_33, %c0_34] : memref<1x1xf32, #tpu.memory_space<smem>>
    memref.store %48, %arg5[%c0_33, %c0_34] : memref<1x1xf32, #tpu.memory_space<smem>>
    return
  }
  func.func @transform_0(%arg0: i32) -> (i32, i32) {
    %c0_i32 = arith.constant 0 : i32
    %c0_i32_0 = arith.constant 0 : i32
    return %arg0, %c0_i32 : i32, i32
  }
  func.func @transform_1(%arg0: i32) -> (i32, i32) {
    %c0_i32 = arith.constant 0 : i32
    %c0_i32_0 = arith.constant 0 : i32
    return %arg0, %c0_i32 : i32, i32
  }
  func.func @transform_2(%arg0: i32) -> (i32, i32) {
    %c0_i32 = arith.constant 0 : i32
    %c0_i32_0 = arith.constant 0 : i32
    %c0_i32_1 = arith.constant 0 : i32
    return %c0_i32, %c0_i32_0 : i32, i32
  }
  func.func @transform_3(%arg0: i32) -> (i32, i32) {
    %c0_i32 = arith.constant 0 : i32
    %c0_i32_0 = arith.constant 0 : i32
    %c0_i32_1 = arith.constant 0 : i32
    return %c0_i32, %c0_i32_0 : i32, i32
  }
  func.func @transform_4(%arg0: i32) -> (i32, i32) {
    %c0_i32 = arith.constant 0 : i32
    %c0_i32_0 = arith.constant 0 : i32
    return %arg0, %c0_i32 : i32, i32
  }
}

</mosaic_0001>

<llo_original>
// kernel: tpu_custom_call.1
$region0: #{tpu_custom_call.1}
  #allocation0 [shape = 'u32[]', space=smem, size = 0x4, offset = 0x4, fixed_abs, tag = 'smem constant byte address 0x4 - core index']
  #allocation1 [shape = 'u32[72,128]{1,0:T(1,128)}', space=vmem, size = 0x9000, scoped, tag = 'internal scratch']
  #allocation2 [shape = 'bf16[8,128]{1,0:T(8,128)(2,1)}', space=vmem, size = 0x800, scoped, tag = 'scratch operand']
  %s0 = inlined_call_operand.hbm [shape: f32[8,128], index: 0, kind: input, shape index: {}]
  %s1 = inlined_call_operand.hbm [shape: bf16[8,128], index: 1, kind: input, shape index: {}]
  %s2 = inlined_call_operand.hbm [shape: bf16[128,128], index: 2, kind: input, shape index: {}]
  %s3 = inlined_call_operand.hbm [shape: bf16[128,128], index: 3, kind: input, shape index: {}]
  %s4 = inlined_call_operand.hbm [shape: f32[1,1], index: 4, kind: output, shape index: {}]
  %s5 = sld [smem:[#allocation0]]
  $region42: #{tpu_custom_call.1} parent=0
    _
  %s7 = ssub.s32 1, %s5
  %s8 = scalar_select 0, %s7, %s5
  $region1: #{tpu_custom_call.1} parent=0
    #allocation3 [shape = 'u8[4096]{0}', space=vmem, size = 0x1000, scoped, tag = 'input window, operand 0, single buffered']
    #allocation4 [shape = 's32[1]{0}', space=sflag, size = 0x4, scoped, tag = 'scoped memory for tpu_custom_call.1']
    #allocation5 [shape = 's32[1]{0}', space=sflag, size = 0x4, scoped, tag = 'scoped memory for tpu_custom_call.1']
    #allocation6 [shape = 'u8[2048]{0}', space=vmem, size = 0x800, scoped, tag = 'input window, operand 1, single buffered']
    #allocation7 [shape = 's32[1]{0}', space=sflag, size = 0x4, scoped, tag = 'scoped memory for tpu_custom_call.1']
    #allocation8 [shape = 'u8[32768]{0}', space=vmem, size = 0x8000, scoped, tag = 'input window, operand 2, single buffered']
    #allocation9 [shape = 'u8[32768]{0}', space=vmem, size = 0x8000, scoped, tag = 'input window, operand 3, single buffered']
    #allocation10 [shape = 's32[1]{0}', space=sflag, size = 0x4, scoped, tag = 'scoped memory for tpu_custom_call.1']
    #allocation11 [shape = 'u8[512]{0}', space=smem, size = 0x200, scoped, tag = 'output window, operand 0, single buffered']
    %9 = vsyncpa [#allocation4], 0
    %10 = vsyncpa [#allocation7], 0
    %11 = vsyncpa [#allocation10], 0
    %12 = vsyncpa [#allocation5], 0
    // Predicated region
    $region2: #{tpu_custom_call.1} parent=1 // pred_check
      _
    $region3: #{tpu_custom_call.1} parent=1 // pred_check_branch
      %14 = sbr.rel (0) target = $region5
    $region4: #{tpu_custom_call.1} parent=1 // pred_region
      %16 = vsyncadd [#allocation4], 0
      %s18 = sshll.u32 %s0, 4
      %s19 = int_to_ptr.hbm [resolvable:$true] %s18
      %s20 = sshll.u32 [#allocation3], 4
      %s21 = int_to_ptr.vmem [resolvable:$true] %s20
      %23 = dma.hbm_to_vmem [thread:$0]  %s19, 128, %s21, [#allocation4]
    $region5: #{tpu_custom_call.1} parent=1 // pred_fallthru
      _
    // Predicated region
    $region6: #{tpu_custom_call.1} parent=1 // pred_check
      _
    $region7: #{tpu_custom_call.1} parent=1 // pred_check_branch
      %25 = sbr.rel (0) target = $region9
    $region8: #{tpu_custom_call.1} parent=1 // pred_region
      %27 = vsyncadd [#allocation7], 0
      %s29 = sshll.u32 %s1, 4
      %s30 = int_to_ptr.hbm [resolvable:$true] %s29
      %s31 = sshll.u32 [#allocation6], 4
      %s32 = int_to_ptr.vmem [resolvable:$true] %s31
      %34 = dma.hbm_to_vmem [thread:$0]  %s30, 64, %s32, [#allocation7]
    $region9: #{tpu_custom_call.1} parent=1 // pred_fallthru
      _
    // Predicated region
    $region10: #{tpu_custom_call.1} parent=1 // pred_check
      _
    $region11: #{tpu_custom_call.1} parent=1 // pred_check_branch
      %36 = sbr.rel (0) target = $region13
    $region12: #{tpu_custom_call.1} parent=1 // pred_region
      %38 = vsyncadd [#allocation7], 0
      %s39 = sshll.u32 %s2, 4
      %s40 = int_to_ptr.hbm [resolvable:$true] %s39
      %s41 = sshll.u32 [#allocation8], 4
      %s42 = int_to_ptr.vmem [resolvable:$true] %s41
      %47 = dma.hbm_to_vmem [thread:$0]  %s40, 1024, %s42, [#allocation7], 64, 64, 4
    $region13: #{tpu_custom_call.1} parent=1 // pred_fallthru
      _
    // Predicated region
    $region14: #{tpu_custom_call.1} parent=1 // pred_check
      _
    $region15: #{tpu_custom_call.1} parent=1 // pred_check_branch
      %49 = sbr.rel (0) target = $region17
    $region16: #{tpu_custom_call.1} parent=1 // pred_region
      %51 = vsyncadd [#allocation10], 0
      %s52 = sshll.u32 %s3, 4
      %s53 = int_to_ptr.hbm [resolvable:$true] %s52
      %s54 = sshll.u32 [#allocation9], 4
      %s55 = int_to_ptr.vmem [resolvable:$true] %s54
      %60 = dma.hbm_to_vmem [thread:$0]  %s53, 1024, %s55, [#allocation10], 64, 64, 4
    $region17: #{tpu_custom_call.1} parent=1 // pred_fallthru
      _
    // Predicated region
    $region18: #{tpu_custom_call.1} parent=1 // pred_check
      _
    $region19: #{tpu_custom_call.1} parent=1 // pred_check_branch
      %62 = sbr.rel (0) target = $region21
    $region20: #{tpu_custom_call.1} parent=1 // pred_region
      %64 = dma.done [#allocation4], 128
    $region21: #{tpu_custom_call.1} parent=1 // pred_fallthru
      _
    // Predicated region
    $region22: #{tpu_custom_call.1} parent=1 // pred_check
      _
    $region23: #{tpu_custom_call.1} parent=1 // pred_check_branch
      %66 = sbr.rel (0) target = $region25
    $region24: #{tpu_custom_call.1} parent=1 // pred_region
      %68 = dma.done [#allocation7], 64
    $region25: #{tpu_custom_call.1} parent=1 // pred_fallthru
      _
    // Predicated region
    $region26: #{tpu_custom_call.1} parent=1 // pred_check
      _
    $region27: #{tpu_custom_call.1} parent=1 // pred_check_branch
      %70 = sbr.rel (0) target = $region29
    $region28: #{tpu_custom_call.1} parent=1 // pred_region
      %72 = dma.done [#allocation7], 1024
    $region29: #{tpu_custom_call.1} parent=1 // pred_fallthru
      _
    // Predicated region
    $region30: #{tpu_custom_call.1} parent=1 // pred_check
      _
    $region31: #{tpu_custom_call.1} parent=1 // pred_check_branch
      %74 = sbr.rel (0) target = $region33
    $region32: #{tpu_custom_call.1} parent=1 // pred_region
      %76 = dma.done [#allocation10], 1024
    $region33: #{tpu_custom_call.1} parent=1 // pred_fallthru
      _
    %v77 = vld [vmem:[#allocation3] sm:$0xff]
    %vm78 = vcmp.eq.f32.partialorder %v77, 1.0
    %80 = vrot.lane.b32.xlu0 %v77, 24
    %v81 = vpop.permute.xlu0 %80
    %v83 = vsel %vm78, %v81, 36.0
    %84 = vrot.lane.b32.xlu0 %v77, 16
    %v85 = vpop.permute.xlu0 %84
    %v87 = vsel %vm78, %v85, -1.0
    %88 = vset.pattern.permute.xlu0 40
    %89 = vperm.xlu0 %88, %v77
    %v90 = vpop.permute.xlu0 %89
    %v92 = vmul.f32 %v90, %v77
    %93 = vset.pattern.permute.xlu0 41
    %94 = vperm.xlu0 %93, %v77
    %v95 = vpop.permute.xlu0 %94
    %v97 = vmul.f32 %v95, %v77
    %99 = vrot.lane.b32.xlu0 %v97, 112
    %v100 = vpop.permute.xlu0 %99
    %v102 = vadd.f32 %v92, %v100
    %103 = vrot.lane.b32.xlu0 %v77, 120
    %v104 = vpop.permute.xlu0 %103
    %v106 = vmul.f32 %v102, %v104
    %v107 = vld [vmem:[#allocation6] sm:$0xf]
    %108 = vst [vmem:[#allocation2] sm:$0xf] %v107
    %v109 = vpack.c.bf16 %v83, %v83
    %111 = vrot.lane.b32.xlu0 %v109, 104
    %v112 = vpop.permute.xlu0 %111
    %vm114 = vcmask 60416
    %115 = vst.msk [vmem:[#allocation2] sm:$0xf] %vm114, %v112
    %v116 = vpack.c.bf16 %v87, %v87
    %118 = vrot.lane.b32.xlu0 %v116, 112
    %v119 = vpop.permute.xlu0 %118
    %vm121 = vcmask 126016
    %122 = vst.msk [vmem:[#allocation2] sm:$0xf] %vm121, %v119
    %v123 = vpack.c.bf16 %v106, %v106
    %vm124 = vcmask 191616
    %125 = vst.msk [vmem:[#allocation2] sm:$0xf] %vm124, %v123
    %v126 = vpack.c.bf16 %v77, %v77
    %vm127 = vcmask 257216
    %128 = vst.msk [vmem:[#allocation2] sm:$0xf] %vm127, %v126
    %v129 = vld [vmem:[#allocation2] sm:$0xf]
    %v130 = vld [vmem:[#allocation8] sm:$0xf]
    %v131 = vld [vmem:[#allocation8 + $0x4] sm:$0xf]
    %v132 = vld [vmem:[#allocation8 + $0x8] sm:$0xf]
    %v133 = vld [vmem:[#allocation8 + $0xc] sm:$0xf]
    %v134 = vld [vmem:[#allocation8 + $0x10] sm:$0xf]
    %v135 = vld [vmem:[#allocation8 + $0x14] sm:$0xf]
    %v136 = vld [vmem:[#allocation8 + $0x18] sm:$0xf]
    %v137 = vld [vmem:[#allocation8 + $0x1c] sm:$0xf]
    %v138 = vld [vmem:[#allocation8 + $0x20] sm:$0xf]
    %v139 = vld [vmem:[#allocation8 + $0x24] sm:$0xf]
    %v140 = vld [vmem:[#allocation8 + $0x28] sm:$0xf]
    %v141 = vld [vmem:[#allocation8 + $0x2c] sm:$0xf]
    %v142 = vld [vmem:[#allocation8 + $0x30] sm:$0xf]
    %v143 = vld [vmem:[#allocation8 + $0x34] sm:$0xf]
    %v144 = vld [vmem:[#allocation8 + $0x38] sm:$0xf]
    %v145 = vld [vmem:[#allocation8 + $0x3c] sm:$0xf]
    %v162 = vunpack.c.l.b16 %v130
    %v163 = vunpack.c.l.b16 %v131
    %v164 = vunpack.c.l.b16 %v132
    %v165 = vunpack.c.l.b16 %v133
    %v166 = vunpack.c.l.b16 %v134
    %v167 = vunpack.c.l.b16 %v135
    %v168 = vunpack.c.l.b16 %v136
    %v169 = vunpack.c.l.b16 %v137
    %v170 = vunpack.c.l.b16 %v138
    %v171 = vunpack.c.l.b16 %v139
    %v172 = vunpack.c.l.b16 %v140
    %v173 = vunpack.c.l.b16 %v141
    %v174 = vunpack.c.l.b16 %v142
    %v175 = vunpack.c.l.b16 %v143
    %v176 = vunpack.c.l.b16 %v144
    %v177 = vunpack.c.l.b16 %v145
    %v178 = vpack.c.b16 %v163, %v162
    %v179 = vpack.c.b16 %v165, %v164
    %v180 = vpack.c.b16 %v167, %v166
    %v181 = vpack.c.b16 %v169, %v168
    %v182 = vpack.c.b16 %v171, %v170
    %v183 = vpack.c.b16 %v173, %v172
    %v184 = vpack.c.b16 %v175, %v174
    %v185 = vpack.c.b16 %v177, %v176
    %194 = vmatpush.bf16.msra.mxu0 %v185
    %195 = vmatpush.bf16.msra.mxu0 %v184
    %196 = vmatpush.bf16.msra.mxu0 %v183
    %197 = vmatpush.bf16.msra.mxu0 %v182
    %198 = vmatpush.bf16.msra.mxu0 %v181
    %199 = vmatpush.bf16.msra.mxu0 %v180
    %200 = vmatpush.bf16.msra.mxu0 %v179
    %201 = vmatpush.bf16.msra.mxu0 %v178
    %202 = vmatmul.bf16.gmra.mxu0 %v129
    %v203 = vpop.f32.mrf.mxu0
    %v204 = vadd.f32 0.0, %v203
    %v205 = vpop.f32.mrf.mxu0
    %206 = vdwg.mxu0
    %v207 = vtanh.pop %v204
    %v208 = vpack.c.bf16 %v207, %v207
    %v209 = vld [vmem:[#allocation9] sm:$0xf]
    %v210 = vld [vmem:[#allocation9 + $0x4] sm:$0xf]
    %v211 = vld [vmem:[#allocation9 + $0x8] sm:$0xf]
    %v212 = vld [vmem:[#allocation9 + $0xc] sm:$0xf]
    %v213 = vld [vmem:[#allocation9 + $0x10] sm:$0xf]
    %v214 = vld [vmem:[#allocation9 + $0x14] sm:$0xf]
    %v215 = vld [vmem:[#allocation9 + $0x18] sm:$0xf]
    %v216 = vld [vmem:[#allocation9 + $0x1c] sm:$0xf]
    %v217 = vld [vmem:[#allocation9 + $0x20] sm:$0xf]
    %v218 = vld [vmem:[#allocation9 + $0x24] sm:$0xf]
    %v219 = vld [vmem:[#allocation9 + $0x28] sm:$0xf]
    %v220 = vld [vmem:[#allocation9 + $0x2c] sm:$0xf]
    %v221 = vld [vmem:[#allocation9 + $0x30] sm:$0xf]
    %v222 = vld [vmem:[#allocation9 + $0x34] sm:$0xf]
    %v223 = vld [vmem:[#allocation9 + $0x38] sm:$0xf]
    %v224 = vld [vmem:[#allocation9 + $0x3c] sm:$0xf]
    %v241 = vunpack.c.l.b16 %v209
    %v242 = vunpack.c.l.b16 %v210
    %v243 = vunpack.c.l.b16 %v211
    %v244 = vunpack.c.l.b16 %v212
    %v245 = vunpack.c.l.b16 %v213
    %v246 = vunpack.c.l.b16 %v214
    %v247 = vunpack.c.l.b16 %v215
    %v248 = vunpack.c.l.b16 %v216
    %v249 = vunpack.c.l.b16 %v217
    %v250 = vunpack.c.l.b16 %v218
    %v251 = vunpack.c.l.b16 %v219
    %v252 = vunpack.c.l.b16 %v220
    %v253 = vunpack.c.l.b16 %v221
    %v254 = vunpack.c.l.b16 %v222
    %v255 = vunpack.c.l.b16 %v223
    %v256 = vunpack.c.l.b16 %v224
    %v257 = vpack.c.b16 %v242, %v241
    %v258 = vpack.c.b16 %v244, %v243
    %v259 = vpack.c.b16 %v246, %v245
    %v260 = vpack.c.b16 %v248, %v247
    %v261 = vpack.c.b16 %v250, %v249
    %v262 = vpack.c.b16 %v252, %v251
    %v263 = vpack.c.b16 %v254, %v253
    %v264 = vpack.c.b16 %v256, %v255
    %273 = vmatpush.bf16.msra.mxu0 %v264
    %274 = vmatpush.bf16.msra.mxu0 %v263
    %275 = vmatpush.bf16.msra.mxu0 %v262
    %276 = vmatpush.bf16.msra.mxu0 %v261
    %277 = vmatpush.bf16.msra.mxu0 %v260
    %278 = vmatpush.bf16.msra.mxu0 %v259
    %279 = vmatpush.bf16.msra.mxu0 %v258
    %280 = vmatpush.bf16.msra.mxu0 %v257
    %281 = vmatmul.bf16.gmra.mxu0 %v208
    %v282 = vpop.f32.mrf.mxu0
    %v283 = vadd.f32 0.0, %v282
    %v284 = vpop.f32.mrf.mxu0
    %285 = vdwg.mxu0
    %287 = vrot.lane.b32.xlu0 %v283, 16
    %v288 = vpop.permute.xlu0 %287
    %v290 = vsub.f32 %v106, %v288
    %292 = vrot.lane.b32.xlu0 %v290, 8
    %v293 = vpop.permute.xlu0 %292
    %v295 = vsel %vm78, %v293, 0.0
    %v296 = vmul.f32 %v295, %v295
    %298 = vrot.lane.b32.xlu0 %v296, 104
    %v299 = vpop.permute.xlu0 %298
    %vm301 = vcmask 64512
    %v302 = vsel %vm301, %v299, 0.0
    %303 = vadd.xlane.f32.xlu0 %v302
    %v304 = vpop.xlane.xlu0 %303
    %v305 = vrot.slane %v304, 4
    %v306 = vadd.f32 %v304, %v305
    %v307 = vrot.slane %v306, 2
    %v308 = vadd.f32 %v306, %v307
    %v309 = vrot.slane %v308, 1
    %v310 = vadd.f32 %v308, %v309
    %s311 = vtos %v310
    %s312 = scalar_lea.smem [#allocation11], 0
    %313 = sst [smem:[%s312]] %s311
    // Predicated region
    $region34: #{tpu_custom_call.1} parent=1 // pred_check
      _
    $region35: #{tpu_custom_call.1} parent=1 // pred_check_branch
      %315 = sbr.rel (0) target = $region37
    $region36: #{tpu_custom_call.1} parent=1 // pred_region
      %317 = vsyncadd [#allocation5], 0
      %s319 = sshll.u32 %s4, 4
      %s320 = int_to_ptr.hbm [resolvable:$true] %s319
      %322 = dma.smem_to_hbm [#allocation11], 16, %s320, [#allocation5]
    $region37: #{tpu_custom_call.1} parent=1 // pred_fallthru
      _
    // Predicated region
    $region38: #{tpu_custom_call.1} parent=1 // pred_check
      _
    $region39: #{tpu_custom_call.1} parent=1 // pred_check_branch
      %324 = sbr.rel (0) target = $region41
    $region40: #{tpu_custom_call.1} parent=1 // pred_region
      %326 = dma.done [#allocation5], 16
    $region41: #{tpu_custom_call.1} parent=1 // pred_fallthru
      _
    %327 = sfence
    %328 = vsyncpa [#allocation4], 1
    %329 = vsyncpa [#allocation7], 1
    %330 = vsyncpa [#allocation10], 1
    %331 = vsyncpa [#allocation5], 1

</llo_original>
